<compile_context>
chip_gen: v6e
topology: v6e:2x2x1
jax: 0.10.0
libtpu: 0.0.40
codegen_flags: <defaults>
</compile_context>

<pallas_src>
import functools
import math

import jax
import jax.numpy as jnp
from jax import lax
from jax.experimental import pallas as pl
from jax.experimental.pallas import tpu as pltpu


def _round_up(v, m):
    return (v + m - 1) // m * m


def _pick_tiles(n):
    """(row tile TM, reduction/column tile TK) for an (n, n) adjacency."""
    if n <= 1024:
        # Full-extent tiles: always layout-legal, no tail masking needed.
        return n, n
    # TM=512 keeps >=2 row tiles on the "parallel" axis (v7x dual-TC);
    # TK=1024 is a multiple of 256 so the MXU contraction is full-width.
    return 512, 1024


# ----------------------------------------------------------------------------
# Kernel 1: degrees.  d = rsqrt(rowsum(adj) + 1); the +1 folds in the self
# loop.  Grid (row_tiles, col_tiles); the reduction axis is last/"arbitrary"
# and the partial sums accumulate directly in the resident output block.
# ----------------------------------------------------------------------------
def _degree_kernel(adj_ref, d_ref, *, n, bk, mask_cols):
    k = pl.program_id(1)

    @pl.when(k == 0)
    def _():
        d_ref[...] = jnp.zeros_like(d_ref)

    a = adj_ref[...].astype(jnp.float32)
    if mask_cols:  # static: only emitted when bk does not divide n
        col = k * bk + lax.broadcasted_iota(jnp.int32, a.shape, 1)
        a = jnp.where(col < n, a, 0.0)
    d_ref[...] += jnp.sum(a, axis=1, keepdims=True)

    @pl.when(k == pl.num_programs(1) - 1)
    def _():
        d_ref[...] = lax.rsqrt(d_ref[...] + 1.0)


# ----------------------------------------------------------------------------
# Kernel 2: s_scaled = d * (x @ W).  Rows beyond n (tail of the TK-padded
# output) are written as exact zeros so the propagation matmul can consume
# padded row blocks safely (no NaN from 0 * garbage).
# ----------------------------------------------------------------------------
def _scale_transform_kernel(x_ref, w_ref, d_ref, s_ref, *, n, bs, mask_rows):
    i = pl.program_id(0)
    support = jnp.dot(x_ref[...], w_ref[...], preferred_element_type=jnp.float32)
    val = d_ref[...] * support
    if mask_rows:
        row = i * bs + lax.broadcasted_iota(jnp.int32, val.shape, 0)
        val = jnp.where(row < n, val, 0.0)
    s_ref[...] = val


# ----------------------------------------------------------------------------
# Kernel 3: propagation.  out = relu(d_row * (adj @ s_scaled + s_scaled_row)).
# adj streams through the MXU (bf16 in HBM, upcast in VMEM); the identity
# (self-loop) term initializes the resident output accumulator.
# ----------------------------------------------------------------------------
def _prop_kernel(adj_ref, s_ref, s_row_ref, d_ref, out_ref, *,
                 n, bk, mask_cols, s_resident):
    k = pl.program_id(1)

    @pl.when(k == 0)
    def _():
        out_ref[...] = s_row_ref[...]          # I @ s_scaled for this row tile

    a = adj_ref[...].astype(jnp.float32)
    if mask_cols:
        col = k * bk + lax.broadcasted_iota(jnp.int32, a.shape, 1)
        a = jnp.where(col < n, a, 0.0)

    if s_resident:
        off = pl.multiple_of(k * bk, bk)
        s_col = s_ref[pl.ds(off, bk), :]       # slice the resident copy
    else:
        s_col = s_ref[...]                     # streamed (bk, F) column block

    out_ref[...] += jnp.dot(a, s_col, preferred_element_type=jnp.float32)

    @pl.when(k == pl.num_programs(1) - 1)
    def _():
        out_ref[...] = jnp.maximum(d_ref[...] * out_ref[...], 0.0)


# ----------------------------------------------------------------------------
# Wrappers
# ----------------------------------------------------------------------------
def _degree_call(adj_s, *, n, bm, bk):
    num_i = pl.cdiv(n, bm)
    num_k = pl.cdiv(n, bk)
    return pl.pallas_call(
        functools.partial(_degree_kernel, n=n, bk=bk, mask_cols=(n % bk) != 0),
        out_shape=jax.ShapeDtypeStruct((n, 1), jnp.float32),
        grid_spec=pltpu.PrefetchScalarGridSpec(
            num_scalar_prefetch=0,
            grid=(num_i, num_k),
            in_specs=[pl.BlockSpec((bm, bk), lambda i, k: (i, k))],
            out_specs=pl.BlockSpec((bm, 1), lambda i, k: (i, 0)),
        ),
        compiler_params=pltpu.CompilerParams(
            dimension_semantics=("parallel", "arbitrary"),
            vmem_limit_bytes=64 * 1024 * 1024),
    )(adj_s)


def degree_inv_sqrt(adj, *, adj_stream_dtype=jnp.bfloat16):
    """(rowsum(adj) + 1)^-0.5 as an (N, 1) float32 array.  Compute once and
    pass to graph_convolution(..., d_inv_sqrt=...) when the same adjacency is
    reused across layers / steps (removes one full adj read per layer)."""
    n = adj.shape[0]
    bm, bk = _pick_tiles(n)
    return _degree_call(adj.astype(adj_stream_dtype), n=n, bm=bm, bk=bk)


def graph_convolution(x, adj, weight, *, d_inv_sqrt=None,
                      adj_stream_dtype=jnp.bfloat16):
    """x: (N, F_in), adj: (N, N), weight: (F_in, F_out) -> (N, F_out) f32."""
    n, f_in = x.shape
    f_out = weight.shape[1]

    x = x.astype(jnp.float32)
    weight = weight.astype(jnp.float32)
    adj_s = adj.astype(adj_stream_dtype)       # bf16 is exact for 0/1 adjacency

    bm, bk = _pick_tiles(n)
    num_i = pl.cdiv(n, bm)
    num_k = pl.cdiv(n, bk)
    n_k_pad = num_k * bk                        # row extent of s_scaled
    mask_cols = (n % bk) != 0

    # Lane-dense feature padding (O(N*F) copies -- negligible vs the O(N^2)
    # adj stream; the adjacency itself is never padded/copied in HBM).
    f_in_pad = _round_up(f_in, 128)
    f_out_pad = _round_up(f_out, 128)
    x_p = jnp.pad(x, ((0, 0), (0, f_in_pad - f_in)))
    w_p = jnp.pad(weight, ((0, f_in_pad - f_in), (0, f_out_pad - f_out)))

    # ---- 1) degrees (skipped when the caller provides them) ----------------
    if d_inv_sqrt is None:
        d_inv_sqrt = _degree_call(adj_s, n=n, bm=bm, bk=bk)
    else:
        d_inv_sqrt = jnp.asarray(d_inv_sqrt, jnp.float32).reshape(n, 1)

    # ---- 2) s_scaled = d * (x @ W), zero-padded to n_k_pad rows ------------
    s_scaled = pl.pallas_call(
        functools.partial(_scale_transform_kernel, n=n, bs=bk,
                          mask_rows=(n_k_pad != n)),
        out_shape=jax.ShapeDtypeStruct((n_k_pad, f_out_pad), jnp.float32),
        grid_spec=pltpu.PrefetchScalarGridSpec(
            num_scalar_prefetch=0,
            grid=(num_k,),
            in_specs=[
                pl.BlockSpec((bk, f_in_pad), lambda i: (i, 0)),      # x rows
                pl.BlockSpec((f_in_pad, f_out_pad), lambda i: (0, 0)),  # W
                pl.BlockSpec((bk, 1), lambda i: (i, 0)),             # d rows
            ],
            out_specs=pl.BlockSpec((bk, f_out_pad), lambda i: (i, 0)),
        ),
        compiler_params=pltpu.CompilerParams(
            dimension_semantics=("parallel",)),
    )(x_p, w_p, d_inv_sqrt)

    # ---- 3) propagation: stream adj tiles through the MXU ------------------
    s_bytes = n_k_pad * f_out_pad * 4
    s_resident = s_bytes <= 8 * 1024 * 1024    # keep whole s_scaled in VMEM
    if s_resident:
        s_col_spec = pl.BlockSpec((n_k_pad, f_out_pad), lambda i, k: (0, 0))
    else:
        s_col_spec = pl.BlockSpec((bk, f_out_pad), lambda i, k: (k, 0))

    out_p = pl.pallas_call(
        functools.partial(_prop_kernel, n=n, bk=bk, mask_cols=mask_cols,
                          s_resident=s_resident),
        out_shape=jax.ShapeDtypeStruct((n, f_out_pad), jnp.float32),
        grid_spec=pltpu.PrefetchScalarGridSpec(
            num_scalar_prefetch=0,
            grid=(num_i, num_k),
            in_specs=[
                pl.BlockSpec((bm, bk), lambda i, k: (i, k)),           # adj tile
                s_col_spec,                                            # s (cols)
                pl.BlockSpec((bm, f_out_pad), lambda i, k: (i, 0)),    # s (rows, I-term)
                pl.BlockSpec((bm, 1), lambda i, k: (i, 0)),            # d (rows)
            ],
            out_specs=pl.BlockSpec((bm, f_out_pad), lambda i, k: (i, 0)),
        ),
        compiler_params=pltpu.CompilerParams(
            dimension_semantics=("parallel", "arbitrary"),
            vmem_limit_bytes=64 * 1024 * 1024),
    )(adj_s, s_scaled, s_scaled, d_inv_sqrt)

    return out_p[:, :f_out]


def init_weight(key, in_features, out_features):
    # Mirrors nn.init.kaiming_uniform_(w, a=sqrt(5)) on an (in, out) tensor:
    # fan_in = w.size(1) = out_features, bound = 1/sqrt(fan_in).
    bound = 1.0 / math.sqrt(out_features)
    return jax.random.uniform(key, (in_features, out_features),
                              dtype=jnp.float32, minval=-bound, maxval=bound)


if __name__ == "__main__":
    key = jax.random.PRNGKey(0)
    k_x, k_adj, k_w = jax.random.split(key, 3)

    N, F_IN, F_OUT = 16, 32, 32

    x = jax.random.normal(k_x, (N, F_IN), dtype=jnp.float32)
    # Symmetric 0/1 adjacency with no self loops.
    a = (jax.random.uniform(k_adj, (N, N)) > 0.7).astype(jnp.float32)
    adj = jnp.clip(a + a.T, 0.0, 1.0) * (1.0 - jnp.eye(N, dtype=jnp.float32))
    weight = init_weight(k_w, F_IN, F_OUT)

    out = graph_convolution(x, adj, weight)
    jax.block_until_ready(out)

    # Pure-JAX reference check (same formulation as the torch module).
    adj_hat = adj + jnp.eye(N, dtype=jnp.float32)
    deg = adj_hat.sum(1)
    d = deg ** -0.5
    d = jnp.where(jnp.isinf(d), 0.0, d)
    ref = jnp.maximum((d[:, None] * adj_hat * d[None, :]) @ (x @ weight), 0.0)
    assert out.shape == (N, F_OUT)
    assert jnp.allclose(out, ref, atol=1e-4, rtol=1e-4), "mismatch vs reference"

    # Amortized path: degrees computed once, reused (the multi-layer case).
    d_pre = degree_inv_sqrt(adj)
    out2 = graph_convolution(x, adj, weight, d_inv_sqrt=d_pre)
    jax.block_until_ready(out2)
    assert jnp.allclose(out2, ref, atol=1e-4, rtol=1e-4), "mismatch (precomputed d)"

    print("KERNEL_OK")
</pallas_src>

<mosaic_0001>
module attributes {stable_mosaic.version = 11 : i64} {
  func.func @_degree_kernel(%arg0: i32, %arg1: i32, %arg2: memref<16x16xbf16, #tpu.memory_space<vmem>>, %arg3: memref<16x1xf32, #tpu.memory_space<vmem>>) attributes {dimension_semantics = [#tpu.dimension_semantics<parallel>, #tpu.dimension_semantics<arbitrary>], iteration_bounds = array<i64: 1, 1>, scalar_prefetch = 0 : i64, scratch_operands = 0 : i64, tpu.core_type = #tpu.core_type<tc>, window_params = [{transform_indices = @transform_0, window_bounds = array<i64: 16, 16>}, {transform_indices = @transform_1, window_bounds = array<i64: 16, 1>}]} {
    %c0_i32 = arith.constant 0 : i32
    %0 = arith.cmpi eq, %arg1, %c0_i32 : i32
    %1 = arith.extui %0 : i1 to i32
    %c0_i32_0 = arith.constant 0 : i32
    %2 = arith.cmpi ne, %1, %c0_i32_0 : i32
    scf.if %2 {
      %cst_8 = arith.constant 0.000000e+00 : f32
      %13 = vector.broadcast %cst_8 : f32 to vector<16x1xf32>
      %c0_9 = arith.constant 0 : index
      %c0_10 = arith.constant 0 : index
      %14 = vector.load %arg3[%c0_9, %c0_10] : memref<16x1xf32, #tpu.memory_space<vmem>>, vector<16x1xf32>
      tpu.vector_store %arg3[%c0_9, %c0_10], %13 {strides = array<i32>} : memref<16x1xf32, #tpu.memory_space<vmem>>, vector<16x1xf32>,
    } else {
    }
    %c0 = arith.constant 0 : index
    %c0_1 = arith.constant 0 : index
    %3 = vector.load %arg2[%c0, %c0_1] : memref<16x16xbf16, #tpu.memory_space<vmem>>, vector<16x16xbf16>
    %4 = arith.extf %3 : vector<16x16xbf16> to vector<16x16xf32>
    %c0_2 = arith.constant 0 : index
    %c0_3 = arith.constant 0 : index
    %5 = vector.load %arg3[%c0_2, %c0_3] : memref<16x1xf32, #tpu.memory_space<vmem>>, vector<16x1xf32>
    %cst = arith.constant dense<0.000000e+00> : vector<16xf32>
    %6 = vector.multi_reduction <add>, %4, %cst [1] : vector<16x16xf32> to vector<16xf32>
    %7 = vector.shape_cast %6 : vector<16xf32> to vector<16x1xf32>
    %8 = arith.addf %5, %7 : vector<16x1xf32>
    %c0_4 = arith.constant 0 : index
    %c0_5 = arith.constant 0 : index
    %9 = vector.load %arg3[%c0_4, %c0_5] : memref<16x1xf32, #tpu.memory_space<vmem>>, vector<16x1xf32>
    tpu.vector_store %arg3[%c0_4, %c0_5], %8 {strides = array<i32>} : memref<16x1xf32, #tpu.memory_space<vmem>>, vector<16x1xf32>,
    %c0_i32_6 = arith.constant 0 : i32
    %10 = arith.cmpi eq, %arg1, %c0_i32_6 : i32
    %11 = arith.extui %10 : i1 to i32
    %c0_i32_7 = arith.constant 0 : i32
    %12 = arith.cmpi ne, %11, %c0_i32_7 : i32
    scf.if %12 {
      %c0_8 = arith.constant 0 : index
      %c0_9 = arith.constant 0 : index
      %13 = vector.load %arg3[%c0_8, %c0_9] : memref<16x1xf32, #tpu.memory_space<vmem>>, vector<16x1xf32>
      %cst_10 = arith.constant 1.000000e+00 : f32
      %14 = vector.broadcast %cst_10 : f32 to vector<16x1xf32>
      %15 = arith.addf %13, %14 : vector<16x1xf32>
      %16 = math.rsqrt %15 : vector<16x1xf32>
      %c0_11 = arith.constant 0 : index
      %c0_12 = arith.constant 0 : index
      %17 = vector.load %arg3[%c0_11, %c0_12] : memref<16x1xf32, #tpu.memory_space<vmem>>, vector<16x1xf32>
      tpu.vector_store %arg3[%c0_11, %c0_12], %16 {strides = array<i32>} : memref<16x1xf32, #tpu.memory_space<vmem>>, vector<16x1xf32>,
    } else {
    }
    return
  }
  func.func @transform_0(%arg0: i32, %arg1: i32) -> (i32, i32) {
    %c0_i32 = arith.constant 0 : i32
    return %arg0, %arg1 : i32, i32
  }
  func.func @transform_1(%arg0: i32, %arg1: i32) -> (i32, i32) {
    %c0_i32 = arith.constant 0 : i32
    %c0_i32_0 = arith.constant 0 : i32
    return %arg0, %c0_i32 : i32, i32
  }
}

</mosaic_0001>

<llo_original>
// kernel: tpu_custom_call.1
$region0: #{tpu_custom_call.1}
  #allocation0 [shape = 'u32[]', space=smem, size = 0x4, offset = 0x4, fixed_abs, tag = 'smem constant byte address 0x4 - core index']
  #allocation1 [shape = 'u32[144,128]{1,0:T(1,128)}', space=vmem, size = 0x12000, scoped, tag = 'internal scratch']
  %s0 = inlined_call_operand.hbm [shape: bf16[16,16], index: 0, kind: input, shape index: {}]
  %s1 = inlined_call_operand.vmem [shape: f32[16,1], index: 1, kind: output, shape index: {}]
  %s2 = sld [smem:[#allocation0]]
  $region26: #{tpu_custom_call.1} parent=0
    _
  %s4 = ssub.s32 1, %s2
  %s5 = scalar_select 0, %s4, %s2
  $region1: #{tpu_custom_call.1} parent=0
    #allocation2 [shape = 'u8[4096]{0}', space=vmem, size = 0x1000, scoped, tag = 'input window, operand 0, single buffered']
    #allocation3 [shape = 's32[1]{0}', space=sflag, size = 0x4, scoped, tag = 'scoped memory for tpu_custom_call.1']
    %6 = vsyncpa [#allocation3], 0
    // Predicated region
    $region2: #{tpu_custom_call.1} parent=1 // pred_check
      _
    $region3: #{tpu_custom_call.1} parent=1 // pred_check_branch
      %8 = sbr.rel (0) target = $region5
    $region4: #{tpu_custom_call.1} parent=1 // pred_region
      %s10 = ssub.s32 128, 128
      %11 = vsyncadd [#allocation3], %s10
      %s12 = sshll.u32 [#allocation2], 4
      %s13 = int_to_ptr.vmem [resolvable:$true] %s12
      %18 = dma.hbm_to_vmem [thread:$0]  %s0, 128, %s13, [#allocation3], 64, 64, 4
    $region5: #{tpu_custom_call.1} parent=1 // pred_fallthru
      _
    // Predicated region
    $region6: #{tpu_custom_call.1} parent=1 // pred_check
      _
    $region7: #{tpu_custom_call.1} parent=1 // pred_check_branch
      %20 = sbr.rel (0) target = $region9
    $region8: #{tpu_custom_call.1} parent=1 // pred_region
      %21 = dma.done [#allocation3], 128
    $region9: #{tpu_custom_call.1} parent=1 // pred_fallthru
      _
    %p22 = scmp.eq.s32.totalorder 0, 0
    // Predicated region
    $region10: #{tpu_custom_call.1} parent=1 // pred_check
      %p23 = pneg %p22
    $region11: #{tpu_custom_call.1} parent=1 // pred_check_branch
      %25 = sbr.rel (%p23) target = $region13
    $region12: #{tpu_custom_call.1} parent=1 // pred_region
      %vm26 = vcmask 7168
      %27 = vst.msk [vmem:[%s1] sm:$0xff] %vm26, 0.0
      %28 = vst.msk [vmem:[%s1 + $0x8] sm:$0xff] %vm26, 0.0
    $region13: #{tpu_custom_call.1} parent=1 // pred_fallthru
      _
    %v29 = vld [vmem:[#allocation2] sm:$0xf]
    %v30 = vld [vmem:[#allocation2 + $0x4] sm:$0xf]
    %v31 = vunpack.c.l.bf16 %v29
    %v32 = vunpack.c.l.bf16 %v30
    %v33 = vld [vmem:[%s1] sm:$0xff]
    %v34 = vld [vmem:[%s1 + $0x8] sm:$0xff]
    %vm35 = vcmask 130048
    %v36 = vsel %vm35, %v31, 0.0
    %37 = vadd.xlane.f32.xlu0 %v36
    %v38 = vpop.xlane.xlu0 %37
    %v39 = vsel %vm35, %v32, 0.0
    %40 = vadd.xlane.f32.xlu0 %v39
    %v41 = vpop.xlane.xlu0 %40
    %v42 = vadd.f32 %v33, %v38
    %v43 = vadd.f32 %v34, %v41
    %vm44 = vcmask 7168
    %45 = vst.msk [vmem:[%s1] sm:$0xff] %vm44, %v42
    %46 = vst.msk [vmem:[%s1 + $0x8] sm:$0xff] %vm44, %v43
    // Predicated region
    $region14: #{tpu_custom_call.1} parent=1 // pred_check
      %p47 = pneg %p22
    $region15: #{tpu_custom_call.1} parent=1 // pred_check_branch
      %49 = sbr.rel (%p47) target = $region17
    $region16: #{tpu_custom_call.1} parent=1 // pred_region
      %v50 = vld [vmem:[%s1] sm:$0xff]
      %v51 = vld [vmem:[%s1 + $0x8] sm:$0xff]
      %v52 = vadd.f32 %v50, 1.0
      %v53 = vadd.f32 %v51, 1.0
      %v54 = vrsqrt.pop %v52
      %v55 = vrsqrt.pop %v53
      %56 = vst.msk [vmem:[%s1] sm:$0xff] %vm44, %v54
      %57 = vst.msk [vmem:[%s1 + $0x8] sm:$0xff] %vm44, %v55
    $region17: #{tpu_custom_call.1} parent=1 // pred_fallthru
      _
    // Predicated region
    $region18: #{tpu_custom_call.1} parent=1 // pred_check
      _
    $region19: #{tpu_custom_call.1} parent=1 // pred_check_branch
      %59 = sbr.rel (0) target = $region21
    $region20: #{tpu_custom_call.1} parent=1 // pred_region
      _
    $region21: #{tpu_custom_call.1} parent=1 // pred_fallthru
      _
    // Predicated region
    $region22: #{tpu_custom_call.1} parent=1 // pred_check
      _
    $region23: #{tpu_custom_call.1} parent=1 // pred_check_branch
      %61 = sbr.rel (0) target = $region25
    $region24: #{tpu_custom_call.1} parent=1 // pred_region
      _
    $region25: #{tpu_custom_call.1} parent=1 // pred_fallthru
      _
    %62 = vsyncpa [#allocation3], 1

</llo_original>
